<compile_context>
chip_gen: v7x
topology: tpu7x:2x2x1
jax: 0.10.0
libtpu: 0.0.40
codegen_flags: <defaults>
</compile_context>

<pallas_src>
import functools
import math

import jax
import jax.numpy as jnp
from jax.experimental import pallas as pl
from jax.experimental.pallas import tpu as pltpu

# action_space is None in this synthetic setup -> python scalars baked in at
# trace time (the * scale + bias affine is elided below when 1.0 / 0.0).
# TODO(synk): if a real action_space is supplied, pass action_scale/bias as
#             kernel inputs (SMEM scalars / broadcast VMEM) instead of globals.
ACTION_SCALE = 1.0
ACTION_BIAS = 0.0

LANE = 128  # TPU lane width; hidden/action dims are padded to this.


def _round_up(x, m):
    return (x + m - 1) // m * m


def _cdiv(a, b):
    return -(-a // b)


def _policy_kernel(state_ref, w1_ref, wstack_ref, bstack_ref, out_ref):
    # state/weights arrive as bf16; all accumulation & epilogue math in f32.
    x = state_ref[...]                                   # (TB, IN) bf16
    b1 = bstack_ref[0:1, :]                              # (1, W_P) f32
    b2 = bstack_ref[1:2, :]
    bm = bstack_ref[2:3, :]

    # linear1 + relu
    h1 = jnp.dot(x, w1_ref[...], preferred_element_type=jnp.float32)
    h1 = jnp.maximum(h1 + b1, 0.0)                       # (TB, W_P) f32

    # linear2 + relu
    h2 = jnp.dot(h1.astype(jnp.bfloat16), wstack_ref[0],
                 preferred_element_type=jnp.float32)
    h2 = jnp.maximum(h2 + b2, 0.0)                       # (TB, W_P) f32

    # mean head + tanh (EUP, f32)
    m = jnp.dot(h2.astype(jnp.bfloat16), wstack_ref[1],
                preferred_element_type=jnp.float32)
    m = jnp.tanh(m + bm)                                 # (TB, W_P) f32

    # Trace-time constant: elide the dead affine when scale=1 / bias=0.
    if ACTION_SCALE != 1.0 or ACTION_BIAS != 0.0:
        m = m * ACTION_SCALE + ACTION_BIAS

    out_ref[...] = m.astype(out_ref.dtype)               # bf16 writeback


def prepare_params(w1, b1, w2, b2, wm, bm):
    """One-time param prep (hoisted out of the per-call forward).

    Weights are given pre-transposed as (in_features, out_features).
    Returns (w1_p, wstack, bstack):
      w1_p   : (num_inputs, W_P) bf16
      wstack : (2, W_P, W_P)     bf16   -- [0]=w2, [1]=wm, zero-padded
      bstack : (3, W_P)          f32    -- [0]=b1, [1]=b2, [2]=bm, zero-padded
    Zero-padding is numerically exact: padded rows/cols contribute 0 through
    matmul/relu/tanh and the padded action columns are sliced off.
    """
    num_inputs, hidden = w1.shape
    num_actions = wm.shape[1]
    W_P = max(_round_up(hidden, LANE), _round_up(num_actions, LANE))

    def pad2(a, rows, cols, dtype):
        return jnp.pad(a, ((0, rows - a.shape[0]),
                           (0, cols - a.shape[1]))).astype(dtype)

    def pad_bias(b):
        b = jnp.asarray(b, jnp.float32).reshape(-1)
        return jnp.pad(b, (0, W_P - b.shape[0]))

    w1_p = pad2(w1, num_inputs, W_P, jnp.bfloat16)
    wstack = jnp.stack([pad2(w2, W_P, W_P, jnp.bfloat16),
                        pad2(wm, W_P, W_P, jnp.bfloat16)])
    bstack = jnp.stack([pad_bias(b1), pad_bias(b2), pad_bias(bm)])
    return w1_p, wstack, bstack


@functools.partial(jax.jit, static_argnames=("num_actions",))
def deterministic_policy_forward(state, w1_p, wstack, bstack, *, num_actions):
    """state: (B, num_inputs) f32; params from prepare_params. Returns (B, A) f32."""
    B, num_inputs = state.shape
    W_P = wstack.shape[-1]

    # Batch tiling: TB multiple of 32 (full bf16 sublane packing), capped at
    # 512; for B >= 256 guarantee >= 2 grid steps so v7x's two TCs both work.
    B32 = _round_up(max(B, 1), 32)
    if B32 < 256:
        n_steps = 1
    else:
        n_steps = max(2, _cdiv(B32, 512))
    TB = _round_up(_cdiv(B32, n_steps), 32)
    B_P = TB * n_steps
    grid = (B_P // TB,)

    # Only the batch dim is padded; feature dim stays at num_inputs (MXU
    # zero-extends K internally, no extra HBM traffic).
    state_p = jnp.pad(state, ((0, B_P - B), (0, 0))).astype(jnp.bfloat16)

    # Resident params: constant index_map -> stay in VMEM across grid steps.
    flops = 2 * B_P * (num_inputs * W_P + 2 * W_P * W_P)
    bytes_accessed = (state_p.size * 2 + w1_p.size * 2 + wstack.size * 2
                      + bstack.size * 4 + B_P * W_P * 2)

    out_p = pl.pallas_call(
        _policy_kernel,
        out_shape=jax.ShapeDtypeStruct((B_P, W_P), jnp.bfloat16),
        grid=grid,
        in_specs=[
            pl.BlockSpec((TB, num_inputs), lambda i: (i, 0)),   # streamed state
            pl.BlockSpec(w1_p.shape, lambda i: (0, 0)),         # resident w1
            pl.BlockSpec(wstack.shape, lambda i: (0, 0, 0)),    # resident w2/wm
            pl.BlockSpec(bstack.shape, lambda i: (0, 0)),       # resident biases
        ],
        out_specs=pl.BlockSpec((TB, W_P), lambda i: (i, 0)),
        compiler_params=pltpu.CompilerParams(
            dimension_semantics=("parallel",)),
        cost_estimate=pl.CostEstimate(
            flops=flops,
            transcendentals=B_P * W_P,
            bytes_accessed=bytes_accessed),
    )(state_p, w1_p, wstack, bstack)

    # Slice real batch/actions and upcast; fuses into the jitted call.
    return out_p[:B, :num_actions].astype(jnp.float32)


def xavier_uniform(key, fan_in, fan_out, gain=1.0):
    # matches torch.nn.init.xavier_uniform_ on a (out, in) weight;
    # stored transposed as (in, out) which has the same bound.
    bound = gain * math.sqrt(6.0 / (fan_in + fan_out))
    return jax.random.uniform(key, (fan_in, fan_out), jnp.float32,
                              minval=-bound, maxval=bound)


def _reference_bf16(state, w1, b1, w2, b2, wm, bm):
    """Plain-JAX reference following the same bf16-matmul / f32-epilogue path."""
    xb = state.astype(jnp.bfloat16)
    h1 = jnp.maximum(
        jnp.dot(xb, w1.astype(jnp.bfloat16),
                preferred_element_type=jnp.float32) + b1, 0.0)
    h2 = jnp.maximum(
        jnp.dot(h1.astype(jnp.bfloat16), w2.astype(jnp.bfloat16),
                preferred_element_type=jnp.float32) + b2, 0.0)
    m = jnp.tanh(
        jnp.dot(h2.astype(jnp.bfloat16), wm.astype(jnp.bfloat16),
                preferred_element_type=jnp.float32) + bm)
    m = m * ACTION_SCALE + ACTION_BIAS
    # Kernel writes back bf16; mirror that rounding for a tight comparison.
    return m.astype(jnp.bfloat16).astype(jnp.float32)


if __name__ == "__main__":
    num_inputs, num_actions, hidden_dim = 16, 4, 32
    batch = 2

    key = jax.random.PRNGKey(0)
    k_state, k1, k2, k3 = jax.random.split(key, 4)

    state = jax.random.normal(k_state, (batch, num_inputs), jnp.float32)

    # Deterministic xavier-uniform weights, zero biases (weights_init_).
    w1 = xavier_uniform(k1, num_inputs, hidden_dim)
    b1 = jnp.zeros((1, hidden_dim), jnp.float32)
    w2 = xavier_uniform(k2, hidden_dim, hidden_dim)
    b2 = jnp.zeros((1, hidden_dim), jnp.float32)
    wm = xavier_uniform(k3, hidden_dim, num_actions)
    bm = jnp.zeros((1, num_actions), jnp.float32)

    # One-time parameter prep (padding / bf16 cast / stacking).
    w1_p, wstack, bstack = prepare_params(w1, b1, w2, b2, wm, bm)

    out = deterministic_policy_forward(state, w1_p, wstack, bstack,
                                       num_actions=num_actions)
    out = jax.block_until_ready(out)
    assert out.shape == (batch, num_actions)

    # Tight check vs the same bf16-matmul path in plain JAX.
    ref_bf16 = _reference_bf16(state, w1, b1, w2, b2, wm, bm)
    assert jnp.allclose(out, ref_bf16, atol=1e-2), "mismatch vs bf16 reference"

    # Loose check vs the full-f32 PyTorch-equivalent math (bf16 rounding only).
    ref_f32 = jnp.maximum(state @ w1 + b1, 0.0)
    ref_f32 = jnp.maximum(ref_f32 @ w2 + b2, 0.0)
    ref_f32 = jnp.tanh(ref_f32 @ wm + bm) * ACTION_SCALE + ACTION_BIAS
    assert jnp.allclose(out, ref_f32, atol=5e-2), "mismatch vs f32 reference"

    print("KERNEL_OK")
</pallas_src>

<mosaic_0001>
module attributes {stable_mosaic.version = 11 : i64} {
  func.func @_policy_kernel(%arg0: i32, %arg1: memref<32x16xbf16, #tpu.memory_space<vmem>>, %arg2: memref<16x128xbf16, #tpu.memory_space<vmem>>, %arg3: memref<2x128x128xbf16, #tpu.memory_space<vmem>>, %arg4: memref<3x128xf32, #tpu.memory_space<vmem>>, %arg5: memref<32x128xbf16, #tpu.memory_space<vmem>>) attributes {dimension_semantics = [#tpu.dimension_semantics<parallel>], iteration_bounds = array<i64: 1>, scalar_prefetch = 0 : i64, scratch_operands = 0 : i64, tpu.core_type = #tpu.core_type<tc>, window_params = [{transform_indices = @transform_0, window_bounds = array<i64: 32, 16>}, {pipeline_mode = #tpu.pipeline_mode<synchronous>, transform_indices = @transform_1, window_bounds = array<i64: 16, 128>}, {pipeline_mode = #tpu.pipeline_mode<synchronous>, transform_indices = @transform_2, window_bounds = array<i64: 2, 128, 128>}, {pipeline_mode = #tpu.pipeline_mode<synchronous>, transform_indices = @transform_3, window_bounds = array<i64: 3, 128>}, {transform_indices = @transform_4, window_bounds = array<i64: 32, 128>}]} {
    %c0 = arith.constant 0 : index
    %c0_0 = arith.constant 0 : index
    %0 = vector.load %arg1[%c0, %c0_0] : memref<32x16xbf16, #tpu.memory_space<vmem>>, vector<32x16xbf16>
    %c0_1 = arith.constant 0 : index
    %c0_2 = arith.constant 0 : index
    %1 = vector.load %arg4[%c0_1, %c0_2] : memref<3x128xf32, #tpu.memory_space<vmem>>, vector<1x128xf32>
    %c1 = arith.constant 1 : index
    %c0_3 = arith.constant 0 : index
    %2 = vector.load %arg4[%c1, %c0_3] : memref<3x128xf32, #tpu.memory_space<vmem>>, vector<1x128xf32>
    %c2 = arith.constant 2 : index
    %c0_4 = arith.constant 0 : index
    %3 = vector.load %arg4[%c2, %c0_4] : memref<3x128xf32, #tpu.memory_space<vmem>>, vector<1x128xf32>
    %c0_5 = arith.constant 0 : index
    %c0_6 = arith.constant 0 : index
    %4 = vector.load %arg2[%c0_5, %c0_6] : memref<16x128xbf16, #tpu.memory_space<vmem>>, vector<16x128xbf16>
    %cst = arith.constant dense<0.000000e+00> : vector<32x128xf32>
    %5 = tpu.matmul %0, %4, %cst {dimension_numbers = #tpu.dot_dimension_numbers<[1], [0], [0], [1], [0, 0, 1, 1], [], []>} : vector<32x16xbf16>, vector<16x128xbf16>, vector<32x128xf32> -> vector<32x128xf32>
    %6 = vector.broadcast %1 : vector<1x128xf32> to vector<32x128xf32>
    %7 = arith.addf %5, %6 : vector<32x128xf32>
    %cst_7 = arith.constant 0.000000e+00 : f32
    %8 = vector.broadcast %cst_7 : f32 to vector<32x128xf32>
    %9 = arith.maximumf %7, %8 : vector<32x128xf32>
    %10 = arith.truncf %9 : vector<32x128xf32> to vector<32x128xbf16>
    %c0_8 = arith.constant 0 : index
    %c0_9 = arith.constant 0 : index
    %c0_10 = arith.constant 0 : index
    %11 = vector.load %arg3[%c0_8, %c0_9, %c0_10] : memref<2x128x128xbf16, #tpu.memory_space<vmem>>, vector<1x128x128xbf16>
    %12 = vector.shape_cast %11 : vector<1x128x128xbf16> to vector<128x128xbf16>
    %cst_11 = arith.constant dense<0.000000e+00> : vector<32x128xf32>
    %13 = tpu.matmul %10, %12, %cst_11 {dimension_numbers = #tpu.dot_dimension_numbers<[1], [0], [0], [1], [0, 0, 1, 1], [], []>} : vector<32x128xbf16>, vector<128x128xbf16>, vector<32x128xf32> -> vector<32x128xf32>
    %14 = vector.broadcast %2 : vector<1x128xf32> to vector<32x128xf32>
    %15 = arith.addf %13, %14 : vector<32x128xf32>
    %cst_12 = arith.constant 0.000000e+00 : f32
    %16 = vector.broadcast %cst_12 : f32 to vector<32x128xf32>
    %17 = arith.maximumf %15, %16 : vector<32x128xf32>
    %18 = arith.truncf %17 : vector<32x128xf32> to vector<32x128xbf16>
    %c1_13 = arith.constant 1 : index
    %c0_14 = arith.constant 0 : index
    %c0_15 = arith.constant 0 : index
    %19 = vector.load %arg3[%c1_13, %c0_14, %c0_15] : memref<2x128x128xbf16, #tpu.memory_space<vmem>>, vector<1x128x128xbf16>
    %20 = vector.shape_cast %19 : vector<1x128x128xbf16> to vector<128x128xbf16>
    %cst_16 = arith.constant dense<0.000000e+00> : vector<32x128xf32>
    %21 = tpu.matmul %18, %20, %cst_16 {dimension_numbers = #tpu.dot_dimension_numbers<[1], [0], [0], [1], [0, 0, 1, 1], [], []>} : vector<32x128xbf16>, vector<128x128xbf16>, vector<32x128xf32> -> vector<32x128xf32>
    %22 = vector.broadcast %3 : vector<1x128xf32> to vector<32x128xf32>
    %23 = arith.addf %21, %22 : vector<32x128xf32>
    %24 = math.tanh %23 : vector<32x128xf32>
    %25 = arith.truncf %24 : vector<32x128xf32> to vector<32x128xbf16>
    %c0_17 = arith.constant 0 : index
    %c0_18 = arith.constant 0 : index
    %26 = vector.load %arg5[%c0_17, %c0_18] : memref<32x128xbf16, #tpu.memory_space<vmem>>, vector<32x128xbf16>
    tpu.vector_store %arg5[%c0_17, %c0_18], %25 {strides = array<i32>} : memref<32x128xbf16, #tpu.memory_space<vmem>>, vector<32x128xbf16>,
    return
  }
  func.func @transform_0(%arg0: i32) -> (i32, i32) {
    %c0_i32 = arith.constant 0 : i32
    %c0_i32_0 = arith.constant 0 : i32
    return %arg0, %c0_i32 : i32, i32
  }
  func.func @transform_1(%arg0: i32) -> (i32, i32) {
    %c0_i32 = arith.constant 0 : i32
    %c0_i32_0 = arith.constant 0 : i32
    %c0_i32_1 = arith.constant 0 : i32
    return %c0_i32, %c0_i32_0 : i32, i32
  }
  func.func @transform_2(%arg0: i32) -> (i32, i32, i32) {
    %c0_i32 = arith.constant 0 : i32
    %c0_i32_0 = arith.constant 0 : i32
    %c0_i32_1 = arith.constant 0 : i32
    %c0_i32_2 = arith.constant 0 : i32
    return %c0_i32, %c0_i32_0, %c0_i32_1 : i32, i32, i32
  }
  func.func @transform_3(%arg0: i32) -> (i32, i32) {
    %c0_i32 = arith.constant 0 : i32
    %c0_i32_0 = arith.constant 0 : i32
    %c0_i32_1 = arith.constant 0 : i32
    return %c0_i32, %c0_i32_0 : i32, i32
  }
  func.func @transform_4(%arg0: i32) -> (i32, i32) {
    %c0_i32 = arith.constant 0 : i32
    %c0_i32_0 = arith.constant 0 : i32
    return %arg0, %c0_i32 : i32, i32
  }
}

</mosaic_0001>

<llo_original>
// kernel: deterministic_policy_forward.1
$region0: #{deterministic_policy_forward.1}
  #allocation0 [shape = 'u32[]', space=smem, size = 0x4, offset = 0x4, fixed_abs, tag = 'smem constant byte address 0x4 - core index']
  #allocation1 [shape = 'u32[144,128]{1,0:T(1,128)}', space=vmem, size = 0x12000, scoped, tag = 'internal scratch']
  %s0 = inlined_call_operand.vmem [shape: bf16[32,16], index: 0, kind: input, shape index: {}]
  %s1 = inlined_call_operand.vmem [shape: bf16[16,128], index: 1, kind: input, shape index: {}]
  %s2 = inlined_call_operand.hbm [shape: bf16[2,128,128], index: 2, kind: input, shape index: {}]
  %s3 = inlined_call_operand.vmem [shape: f32[3,128], index: 3, kind: input, shape index: {}]
  %s4 = inlined_call_operand.vmem [shape: bf16[32,128], index: 4, kind: output, shape index: {}]
  %s5 = sld [smem:[#allocation0]]
  $region30: #{deterministic_policy_forward.1} parent=0
    _
  %s7 = ssub.s32 1, %s5
  %s8 = scalar_select 0, %s7, %s5
  $region1: #{deterministic_policy_forward.1} parent=0
    #allocation2 [shape = 'u8[65536]{0}', space=vmem, size = 0x10000, scoped, tag = 'input window, operand 2, single buffered']
    #allocation3 [shape = 's32[1]{0}', space=sflag, size = 0x4, scoped, tag = 'scoped memory for deterministic_policy_forward.1']
    %9 = vsyncpa [#allocation3], 0
    // Predicated region
    $region2: #{deterministic_policy_forward.1} parent=1 // pred_check
      _
    $region3: #{deterministic_policy_forward.1} parent=1 // pred_check_branch
      %11 = sbr.rel (0) target = $region5
    $region4: #{deterministic_policy_forward.1} parent=1 // pred_region
      _
    $region5: #{deterministic_policy_forward.1} parent=1 // pred_fallthru
      _
    // Predicated region
    $region6: #{deterministic_policy_forward.1} parent=1 // pred_check
      _
    $region7: #{deterministic_policy_forward.1} parent=1 // pred_check_branch
      %13 = sbr.rel (0) target = $region9
    $region8: #{deterministic_policy_forward.1} parent=1 // pred_region
      _
    $region9: #{deterministic_policy_forward.1} parent=1 // pred_fallthru
      _
    // Predicated region
    $region10: #{deterministic_policy_forward.1} parent=1 // pred_check
      _
    $region11: #{deterministic_policy_forward.1} parent=1 // pred_check_branch
      %15 = sbr.rel (0) target = $region13
    $region12: #{deterministic_policy_forward.1} parent=1 // pred_region
      %s17 = ssub.s32 2048, 2048
      %18 = vsyncadd [#allocation3], %s17
      %s19 = sshll.u32 [#allocation2], 4
      %s20 = int_to_ptr.vmem [resolvable:$true] %s19
      %25 = dma.hbm_to_vmem [thread:$0]  %s2, 2048, %s20, [#allocation3], 64, 64, 4
    $region13: #{deterministic_policy_forward.1} parent=1 // pred_fallthru
      _
    // Predicated region
    $region14: #{deterministic_policy_forward.1} parent=1 // pred_check
      _
    $region15: #{deterministic_policy_forward.1} parent=1 // pred_check_branch
      %27 = sbr.rel (0) target = $region17
    $region16: #{deterministic_policy_forward.1} parent=1 // pred_region
      _
    $region17: #{deterministic_policy_forward.1} parent=1 // pred_fallthru
      _
    // Predicated region
    $region18: #{deterministic_policy_forward.1} parent=1 // pred_check
      _
    $region19: #{deterministic_policy_forward.1} parent=1 // pred_check_branch
      %29 = sbr.rel (0) target = $region21
    $region20: #{deterministic_policy_forward.1} parent=1 // pred_region
      %30 = dma.done [#allocation3], 2048
    $region21: #{deterministic_policy_forward.1} parent=1 // pred_fallthru
      _
    %v32 = vld [vmem:[%s0] sm:$0xf]
    %v33 = vld [vmem:[%s0 + $0x4] sm:$0xf]
    %v34 = vld [vmem:[%s0 + $0x8] sm:$0xf]
    %v35 = vld [vmem:[%s0 + $0xc] sm:$0xf]
    %v36 = vld [vmem:[%s3] sm:$0x1]
    %v37 = vld [vmem:[%s3 + $0x1] sm:$0x1]
    %v38 = vld [vmem:[%s3 + $0x2] sm:$0x1]
    %v39 = vld [vmem:[%s1] sm:$0xf]
    %v40 = vld [vmem:[%s1 + $0x4] sm:$0xf]
    %v41 = vlaneseq
    %v42 = vshrl.u32 %v41, 7
    %v43 = vsub.s32 0, %v42
    %v44 = vrot.slane %v36, %v43
    %v49 = vunpack.c.l.b16 %v32
    %v50 = vunpack.c.l.b16 %v33
    %v51 = vunpack.c.l.b16 %v34
    %v52 = vunpack.c.l.b16 %v35
    %v53 = vpack.c.b16 %v50, %v49
    %v54 = vpack.c.b16 %v52, %v51
    %v57 = vunpack.c.l.b16 %v39
    %v58 = vunpack.c.l.b16 %v40
    %v59 = vpack.c.b16 %v58, %v57
    %vm61 = vcmask 130048
    %v63 = vsel %vm61, %v53, 0
    %v66 = vsel %vm61, %v54, 0
    %68 = vmatprep.subr.bf16.mxu0 0
    %69 = vmatpush1.bf16.msra.mxu0 %v59
    %70 = vmatprep.subr.bf16.mxu0 0
    %71 = vmatpush1.bf16.msra.mxu0 0
    %72 = vmatprep.subr.bf16.mxu0 0
    %73 = vmatpush1.bf16.msra.mxu0 0
    %74 = vmatprep.subr.bf16.mxu0 0
    %75 = vmatpush1.bf16.msra.mxu0 0
    %76 = vmatprep.subr.bf16.mxu0 0
    %77 = vmatpush1.bf16.msra.mxu0 0
    %78 = vmatprep.subr.bf16.mxu0 0
    %79 = vmatpush1.bf16.msra.mxu0 0
    %80 = vmatprep.subr.bf16.mxu0 0
    %81 = vmatpush1.bf16.msra.mxu0 0
    %82 = vmatprep.subr.bf16.mxu0 0
    %83 = vmatpush1.bf16.msra.mxu0 0
    %84 = vmatprep.subr.bf16.mxu0 0
    %85 = vmatpush1.bf16.msra.mxu0 0
    %86 = vmatprep.subr.bf16.mxu0 0
    %87 = vmatpush1.bf16.msra.mxu0 0
    %88 = vmatprep.subr.bf16.mxu0 0
    %89 = vmatpush1.bf16.msra.mxu0 0
    %90 = vmatprep.subr.bf16.mxu0 0
    %91 = vmatpush1.bf16.msra.mxu0 0
    %92 = vmatprep.subr.bf16.mxu0 0
    %93 = vmatpush1.bf16.msra.mxu0 0
    %94 = vmatprep.subr.bf16.mxu0 0
    %95 = vmatpush1.bf16.msra.mxu0 0
    %96 = vmatprep.subr.bf16.mxu0 0
    %97 = vmatpush1.bf16.msra.mxu0 0
    %98 = vmatprep.subr.bf16.mxu0 0
    %99 = vmatpush1.bf16.msra.mxu0 0
    %100 = vmatprep.mubr.bf16.mxu0 0
    %101 = vmatmul.mubr.bf16.gmra.mrb[0].mxu0 %v63
    %v102 = vpop.f32.mrb[0].mxu0
    %v103 = vadd.f32 %v44, %v102
    %v104 = vpop.f32.mrb[0].mxu0
    %v105 = vpop.f32.mrb[0].mxu0
    %v106 = vadd.f32 %v44, %v105
    %v107 = vpop.f32.mrb[0].mxu0
    %108 = vmatprep.mubr.bf16.mxu0 0
    %109 = vmatmul.mubr.bf16.gmra.mrb[0].mxu0 %v66
    %v110 = vpop.f32.mrb[0].mxu0
    %v111 = vadd.f32 %v44, %v110
    %v112 = vpop.f32.mrb[0].mxu0
    %v113 = vpop.f32.mrb[0].mxu0
    %v114 = vadd.f32 %v44, %v113
    %v115 = vpop.f32.mrb[0].mxu0
    %116 = vdwg.mxu0
    %v117 = vmax.f32 %v103, 0.0
    %v118 = vmax.f32 %v106, 0.0
    %v119 = vmax.f32 %v111, 0.0
    %v120 = vmax.f32 %v114, 0.0
    %v121 = vpack.c.bf16 %v118, %v117
    %v122 = vpack.c.bf16 %v120, %v119
    %v123 = vld [vmem:[#allocation2] sm:$0xf]
    %v124 = vld [vmem:[#allocation2 + $0x4] sm:$0xf]
    %v125 = vld [vmem:[#allocation2 + $0x8] sm:$0xf]
    %v126 = vld [vmem:[#allocation2 + $0xc] sm:$0xf]
    %v127 = vld [vmem:[#allocation2 + $0x10] sm:$0xf]
    %v128 = vld [vmem:[#allocation2 + $0x14] sm:$0xf]
    %v129 = vld [vmem:[#allocation2 + $0x18] sm:$0xf]
    %v130 = vld [vmem:[#allocation2 + $0x1c] sm:$0xf]
    %v131 = vld [vmem:[#allocation2 + $0x20] sm:$0xf]
    %v132 = vld [vmem:[#allocation2 + $0x24] sm:$0xf]
    %v133 = vld [vmem:[#allocation2 + $0x28] sm:$0xf]
    %v134 = vld [vmem:[#allocation2 + $0x2c] sm:$0xf]
    %v135 = vld [vmem:[#allocation2 + $0x30] sm:$0xf]
    %v136 = vld [vmem:[#allocation2 + $0x34] sm:$0xf]
    %v137 = vld [vmem:[#allocation2 + $0x38] sm:$0xf]
    %v138 = vld [vmem:[#allocation2 + $0x3c] sm:$0xf]
    %v139 = vlaneseq
    %v140 = vshrl.u32 %v139, 7
    %v141 = vsub.s32 0, %v140
    %v142 = vrot.slane %v37, %v141
    %v159 = vunpack.c.l.b16 %v123
    %v160 = vunpack.c.l.b16 %v124
    %v161 = vunpack.c.l.b16 %v125
    %v162 = vunpack.c.l.b16 %v126
    %v163 = vunpack.c.l.b16 %v127
    %v164 = vunpack.c.l.b16 %v128
    %v165 = vunpack.c.l.b16 %v129
    %v166 = vunpack.c.l.b16 %v130
    %v167 = vunpack.c.l.b16 %v131
    %v168 = vunpack.c.l.b16 %v132
    %v169 = vunpack.c.l.b16 %v133
    %v170 = vunpack.c.l.b16 %v134
    %v171 = vunpack.c.l.b16 %v135
    %v172 = vunpack.c.l.b16 %v136
    %v173 = vunpack.c.l.b16 %v137
    %v174 = vunpack.c.l.b16 %v138
    %v175 = vpack.c.b16 %v160, %v159
    %v176 = vpack.c.b16 %v162, %v161
    %v177 = vpack.c.b16 %v164, %v163
    %v178 = vpack.c.b16 %v166, %v165
    %v179 = vpack.c.b16 %v168, %v167
    %v180 = vpack.c.b16 %v170, %v169
    %v181 = vpack.c.b16 %v172, %v171
    %v182 = vpack.c.b16 %v174, %v173
    %191 = vmatprep.subr.bf16.mxu0 0
    %192 = vmatpush1.bf16.msra.mxu0 %v175
    %193 = vmatprep.subr.bf16.mxu0 0
    %194 = vmatpush1.bf16.msra.mxu0 %v176
    %195 = vmatprep.subr.bf16.mxu0 0
    %196 = vmatpush1.bf16.msra.mxu0 %v177
    %197 = vmatprep.subr.bf16.mxu0 0
    %198 = vmatpush1.bf16.msra.mxu0 %v178
    %199 = vmatprep.subr.bf16.mxu0 0
    %200 = vmatpush1.bf16.msra.mxu0 %v179
    %201 = vmatprep.subr.bf16.mxu0 0
    %202 = vmatpush1.bf16.msra.mxu0 %v180
    %203 = vmatprep.subr.bf16.mxu0 0
    %204 = vmatpush1.bf16.msra.mxu0 %v181
    %205 = vmatprep.subr.bf16.mxu0 0
    %206 = vmatpush1.bf16.msra.mxu0 %v182
    %207 = vmatprep.subr.bf16.mxu0 0
    %208 = vmatpush1.bf16.msra.mxu0 0
    %209 = vmatprep.subr.bf16.mxu0 0
    %210 = vmatpush1.bf16.msra.mxu0 0
    %211 = vmatprep.subr.bf16.mxu0 0
    %212 = vmatpush1.bf16.msra.mxu0 0
    %213 = vmatprep.subr.bf16.mxu0 0
    %214 = vmatpush1.bf16.msra.mxu0 0
    %215 = vmatprep.subr.bf16.mxu0 0
    %216 = vmatpush1.bf16.msra.mxu0 0
    %217 = vmatprep.subr.bf16.mxu0 0
    %218 = vmatpush1.bf16.msra.mxu0 0
    %219 = vmatprep.subr.bf16.mxu0 0
    %220 = vmatpush1.bf16.msra.mxu0 0
    %221 = vmatprep.subr.bf16.mxu0 0
    %222 = vmatpush1.bf16.msra.mxu0 0
    %223 = vmatprep.mubr.bf16.mxu0 0
    %224 = vmatmul.mubr.bf16.gmra.mrb[0].mxu0 %v121
    %v225 = vpop.f32.mrb[0].mxu0
    %v226 = vadd.f32 %v142, %v225
    %v227 = vpop.f32.mrb[0].mxu0
    %v228 = vpop.f32.mrb[0].mxu0
    %v229 = vadd.f32 %v142, %v228
    %v230 = vpop.f32.mrb[0].mxu0
    %231 = vmatprep.mubr.bf16.mxu0 0
    %232 = vmatmul.mubr.bf16.gmra.mrb[0].mxu0 %v122
    %v233 = vpop.f32.mrb[0].mxu0
    %v234 = vadd.f32 %v142, %v233
    %v235 = vpop.f32.mrb[0].mxu0
    %v236 = vpop.f32.mrb[0].mxu0
    %v237 = vadd.f32 %v142, %v236
    %v238 = vpop.f32.mrb[0].mxu0
    %239 = vdwg.mxu0
    %v240 = vmax.f32 %v226, 0.0
    %v241 = vmax.f32 %v229, 0.0
    %v242 = vmax.f32 %v234, 0.0
    %v243 = vmax.f32 %v237, 0.0
    %v244 = vpack.c.bf16 %v241, %v240
    %v245 = vpack.c.bf16 %v243, %v242
    %s246 = scalar_lea.vmem [#allocation2], 64
    %v247 = vld [vmem:[%s246] sm:$0xf]
    %v248 = vld [vmem:[%s246 + $0x4] sm:$0xf]
    %v249 = vld [vmem:[%s246 + $0x8] sm:$0xf]
    %v250 = vld [vmem:[%s246 + $0xc] sm:$0xf]
    %v251 = vld [vmem:[%s246 + $0x10] sm:$0xf]
    %v252 = vld [vmem:[%s246 + $0x14] sm:$0xf]
    %v253 = vld [vmem:[%s246 + $0x18] sm:$0xf]
    %v254 = vld [vmem:[%s246 + $0x1c] sm:$0xf]
    %v255 = vld [vmem:[%s246 + $0x20] sm:$0xf]
    %v256 = vld [vmem:[%s246 + $0x24] sm:$0xf]
    %v257 = vld [vmem:[%s246 + $0x28] sm:$0xf]
    %v258 = vld [vmem:[%s246 + $0x2c] sm:$0xf]
    %v259 = vld [vmem:[%s246 + $0x30] sm:$0xf]
    %v260 = vld [vmem:[%s246 + $0x34] sm:$0xf]
    %v261 = vld [vmem:[%s246 + $0x38] sm:$0xf]
    %v262 = vld [vmem:[%s246 + $0x3c] sm:$0xf]
    %v263 = vlaneseq
    %v264 = vshrl.u32 %v263, 7
    %v265 = vsub.s32 0, %v264
    %v266 = vrot.slane %v38, %v265
    %v283 = vunpack.c.l.b16 %v247
    %v284 = vunpack.c.l.b16 %v248
    %v285 = vunpack.c.l.b16 %v249
    %v286 = vunpack.c.l.b16 %v250
    %v287 = vunpack.c.l.b16 %v251
    %v288 = vunpack.c.l.b16 %v252
    %v289 = vunpack.c.l.b16 %v253
    %v290 = vunpack.c.l.b16 %v254
    %v291 = vunpack.c.l.b16 %v255
    %v292 = vunpack.c.l.b16 %v256
    %v293 = vunpack.c.l.b16 %v257
    %v294 = vunpack.c.l.b16 %v258
    %v295 = vunpack.c.l.b16 %v259
    %v296 = vunpack.c.l.b16 %v260
    %v297 = vunpack.c.l.b16 %v261
    %v298 = vunpack.c.l.b16 %v262
    %v299 = vpack.c.b16 %v284, %v283
    %v300 = vpack.c.b16 %v286, %v285
    %v301 = vpack.c.b16 %v288, %v287
    %v302 = vpack.c.b16 %v290, %v289
    %v303 = vpack.c.b16 %v292, %v291
    %v304 = vpack.c.b16 %v294, %v293
    %v305 = vpack.c.b16 %v296, %v295
    %v306 = vpack.c.b16 %v298, %v297
    %315 = vmatprep.subr.bf16.mxu0 0
    %316 = vmatpush1.bf16.msra.mxu0 %v299
    %317 = vmatprep.subr.bf16.mxu0 0
    %318 = vmatpush1.bf16.msra.mxu0 %v300
    %319 = vmatprep.subr.bf16.mxu0 0
    %320 = vmatpush1.bf16.msra.mxu0 %v301
    %321 = vmatprep.subr.bf16.mxu0 0
    %322 = vmatpush1.bf16.msra.mxu0 %v302
    %323 = vmatprep.subr.bf16.mxu0 0
    %324 = vmatpush1.bf16.msra.mxu0 %v303
    %325 = vmatprep.subr.bf16.mxu0 0
    %326 = vmatpush1.bf16.msra.mxu0 %v304
    %327 = vmatprep.subr.bf16.mxu0 0
    %328 = vmatpush1.bf16.msra.mxu0 %v305
    %329 = vmatprep.subr.bf16.mxu0 0
    %330 = vmatpush1.bf16.msra.mxu0 %v306
    %331 = vmatprep.subr.bf16.mxu0 0
    %332 = vmatpush1.bf16.msra.mxu0 0
    %333 = vmatprep.subr.bf16.mxu0 0
    %334 = vmatpush1.bf16.msra.mxu0 0
    %335 = vmatprep.subr.bf16.mxu0 0
    %336 = vmatpush1.bf16.msra.mxu0 0
    %337 = vmatprep.subr.bf16.mxu0 0
    %338 = vmatpush1.bf16.msra.mxu0 0
    %339 = vmatprep.subr.bf16.mxu0 0
    %340 = vmatpush1.bf16.msra.mxu0 0
    %341 = vmatprep.subr.bf16.mxu0 0
    %342 = vmatpush1.bf16.msra.mxu0 0
    %343 = vmatprep.subr.bf16.mxu0 0
    %344 = vmatpush1.bf16.msra.mxu0 0
    %345 = vmatprep.subr.bf16.mxu0 0
    %346 = vmatpush1.bf16.msra.mxu0 0
    %347 = vmatprep.mubr.bf16.mxu0 0
    %348 = vmatmul.mubr.bf16.gmra.mrb[0].mxu0 %v244
    %v349 = vpop.f32.mrb[0].mxu0
    %v350 = vadd.f32 %v266, %v349
    %v351 = vpop.f32.mrb[0].mxu0
    %v352 = vpop.f32.mrb[0].mxu0
    %v353 = vadd.f32 %v266, %v352
    %v354 = vpop.f32.mrb[0].mxu0
    %355 = vmatprep.mubr.bf16.mxu0 0
    %356 = vmatmul.mubr.bf16.gmra.mrb[0].mxu0 %v245
    %v357 = vpop.f32.mrb[0].mxu0
    %v358 = vadd.f32 %v266, %v357
    %v359 = vpop.f32.mrb[0].mxu0
    %v360 = vpop.f32.mrb[0].mxu0
    %v361 = vadd.f32 %v266, %v360
    %v362 = vpop.f32.mrb[0].mxu0
    %363 = vdwg.mxu0
    %v364 = vtanh.pop %v350
    %v365 = vtanh.pop %v353
    %v366 = vtanh.pop %v358
    %v367 = vtanh.pop %v361
    %v368 = vpack.c.bf16 %v365, %v364
    %v369 = vpack.c.bf16 %v367, %v366
    %v372 = vunpack.c.l.b16 %v368
    %v373 = vunpack.c.h.b16 %v368
    %v374 = vunpack.c.l.b16 %v369
    %v375 = vunpack.c.h.b16 %v369
    %v376 = vpack.c.b16 %v372, %v372
    %v377 = vpack.c.b16 %v373, %v373
    %v378 = vpack.c.b16 %v374, %v374
    %v379 = vpack.c.b16 %v375, %v375
    %384 = vst [vmem:[%s4] sm:$0xf] %v376
    %385 = vst [vmem:[%s4 + $0x4] sm:$0xf] %v377
    %386 = vst [vmem:[%s4 + $0x8] sm:$0xf] %v378
    %387 = vst [vmem:[%s4 + $0xc] sm:$0xf] %v379
    // Predicated region
    $region22: #{deterministic_policy_forward.1} parent=1 // pred_check
      _
    $region23: #{deterministic_policy_forward.1} parent=1 // pred_check_branch
      %389 = sbr.rel (0) target = $region25
    $region24: #{deterministic_policy_forward.1} parent=1 // pred_region
      _
    $region25: #{deterministic_policy_forward.1} parent=1 // pred_fallthru
      _
    // Predicated region
    $region26: #{deterministic_policy_forward.1} parent=1 // pred_check
      _
    $region27: #{deterministic_policy_forward.1} parent=1 // pred_check_branch
      %391 = sbr.rel (0) target = $region29
    $region28: #{deterministic_policy_forward.1} parent=1 // pred_region
      _
    $region29: #{deterministic_policy_forward.1} parent=1 // pred_fallthru
      _
    %392 = vsyncpa [#allocation3], 1

</llo_original>
